<compile_context>
chip_gen: v6e
topology: v6e:2x2x1
jax: 0.10.0
libtpu: 0.0.40
codegen_flags: <defaults>
</compile_context>

<pallas_src>
import functools

import jax
import jax.numpy as jnp
from jax.experimental import pallas as pl
from jax.experimental.pallas import tpu as pltpu


def _round_up(a, b):
    return -(-a // b) * b


def rbf_kernel(xt_ref, c_ref, vt_ref, o_ref, acc_ref, *, eps):
    # xt_ref:  (2, TN)    query coords, lane-dense along queries
    # c_ref:   (MC, 2)    chunk of centers
    # vt_ref:  (DV, MC)   chunk of values, transposed (lane-dense along M)
    # o_ref:   (DV, TN)   output tile (lane-dense along queries)
    # acc_ref: (DV, TN)   f32 accumulator, persistent across the M-chunk axis
    k = pl.program_id(1)

    @pl.when(k == 0)
    def _():
        acc_ref[...] = jnp.zeros_like(acc_ref)

    xt = xt_ref[...]                              # (2, TN)
    c = c_ref[...]                                # (MC, 2)
    diff_k = c[:, 0:1] - xt[0:1, :]               # (MC, TN) broadcast subtract (VPU)
    diff_t = c[:, 1:2] - xt[1:2, :]               # (MC, TN)
    dist_sq = diff_k * diff_k + diff_t * diff_t   # (MC, TN)
    rbf = jnp.exp((-(eps * eps)) * dist_sq)       # (MC, TN) EUP exp (the real bottleneck)

    # (DV, MC) @ (MC, TN) -> (DV, TN) on the MXU; tiny vs. the exp stream.
    acc_ref[...] += jnp.dot(vt_ref[...], rbf, preferred_element_type=jnp.float32)

    @pl.when(k == pl.num_programs(1) - 1)
    def _():
        o_ref[...] = acc_ref[...].astype(o_ref.dtype)


def rbf_layer(x, centers, values, eps=1.0, tn=512, mc=512):
    """Pallas equivalent of RBFLayer.forward.

    x: (N, 2); centers: (M, 2); values: (M,) or (M, DV).
    Returns (N,) or (N, DV) matching the values rank.
    """
    N = x.shape[0]
    M = centers.shape[0]
    squeeze = values.ndim == 1
    values_2d = values.reshape(M, -1)             # (M, DV)
    DV = values_2d.shape[1]
    dtype = x.dtype
    itemsize = jnp.dtype(dtype).itemsize

    # Tile sizes: lane-dense multiples of 128, never larger than the padded extent.
    tn = max(128, _round_up(int(tn), 128))
    mc = max(128, _round_up(int(mc), 128))
    tn_eff = min(tn, _round_up(N, 128))
    mc_eff = min(mc, _round_up(M, 128))
    Np = _round_up(N, tn_eff)
    Mp = _round_up(M, mc_eff)

    # Wrapper-side layout plumbing (lane-dense queries / values, zero padding).
    x_t = jnp.zeros((2, Np), dtype).at[:, :N].set(x.T)                 # (2, Np)
    c_pad = jnp.zeros((Mp, 2), centers.dtype).at[:M, :].set(centers)   # (Mp, 2)
    v_t = jnp.zeros((DV, Mp), values_2d.dtype).at[:, :M].set(values_2d.T)  # (DV, Mp)

    grid = (Np // tn_eff, Mp // mc_eff)

    # VMEM budget estimate (with padding rules) + headroom; clamp for v7x (64 MiB).
    def _ru8(v):
        return _round_up(max(int(v), 1), 8)

    est_bytes = (
        2 * _ru8(2) * tn_eff * itemsize            # x tiles (double-buffered)
        + 2 * _ru8(mc_eff) * 128 * itemsize        # centers tiles (lane pad 2->128)
        + 2 * _ru8(DV) * mc_eff * itemsize         # values tiles
        + 2 * _ru8(DV) * tn_eff * itemsize         # output tiles
        + _ru8(DV) * tn_eff * 4                    # accumulator scratch
        + 6 * mc_eff * tn_eff * 4                  # elementwise intermediates headroom
    )
    vmem_limit = int(min(max(est_bytes + (8 << 20), 16 << 20), 64 << 20))

    cost = pl.CostEstimate(
        flops=int(2 * Np * Mp * DV + 6 * Np * Mp),
        transcendentals=int(Np * Mp),
        bytes_accessed=int((2 * Np + 2 * Mp + DV * Mp + DV * Np) * itemsize),
    )

    out_t = pl.pallas_call(
        functools.partial(rbf_kernel, eps=float(eps)),
        out_shape=jax.ShapeDtypeStruct((DV, Np), dtype),
        grid_spec=pltpu.PrefetchScalarGridSpec(
            num_scalar_prefetch=0,
            grid=grid,
            in_specs=[
                pl.BlockSpec((2, tn_eff), lambda i, k: (0, i)),       # x (2, TN)
                pl.BlockSpec((mc_eff, 2), lambda i, k: (k, 0)),       # centers chunk
                pl.BlockSpec((DV, mc_eff), lambda i, k: (0, k)),      # values chunk
            ],
            out_specs=pl.BlockSpec((DV, tn_eff), lambda i, k: (0, i)),
            scratch_shapes=[pltpu.VMEM((DV, tn_eff), jnp.float32)],
        ),
        compiler_params=pltpu.CompilerParams(
            dimension_semantics=("parallel", "arbitrary"),
            vmem_limit_bytes=vmem_limit,
        ),
        cost_estimate=cost,
    )(x_t, c_pad, v_t)

    out = out_t.T[:N]            # (N, DV)
    if squeeze:
        out = out.reshape(N)
    return out


def rbf_layer_ref(x, centers, values, eps=1.0):
    """Pure-JAX reference mirroring the PyTorch forward exactly."""
    diff_k = x[:, 0][:, None] - centers[:, 0][None, :]
    diff_t = x[:, 1][:, None] - centers[:, 1][None, :]
    dist_sq = diff_k ** 2 + diff_t ** 2
    rbf = jnp.exp(-(eps ** 2) * dist_sq)
    return rbf @ values


if __name__ == "__main__":
    key = jax.random.PRNGKey(0)
    k_x, k_c, k_v, k_x2, k_c2, k_v2 = jax.random.split(key, 6)

    # Case 1: scalar-valued RBF (values shape (M,)).
    N, M = 256, 128
    eps = 1.0
    x = jax.random.normal(k_x, (N, 2), dtype=jnp.float32)        # (k, t) query points
    centers = jax.random.normal(k_c, (M, 2), dtype=jnp.float32)  # RBF centers
    values = jax.random.normal(k_v, (M,), dtype=jnp.float32)     # RBF weights

    out = jax.block_until_ready(rbf_layer(x, centers, values, eps=eps))
    ref = rbf_layer_ref(x, centers, values, eps=eps)
    assert out.shape == ref.shape == (N,)
    assert jnp.allclose(out, ref, atol=2e-3, rtol=1e-3), "case 1 mismatch vs reference"

    # Case 2: ragged N/M + vector-valued RBF -> exercises padding and the
    # chunked-M accumulator path (grid = (2, 3)).
    N2, M2, DV2 = 200, 300, 3
    eps2 = 0.7
    x2 = jax.random.normal(k_x2, (N2, 2), dtype=jnp.float32)
    centers2 = jax.random.normal(k_c2, (M2, 2), dtype=jnp.float32)
    values2 = jax.random.normal(k_v2, (M2, DV2), dtype=jnp.float32)

    out2 = jax.block_until_ready(
        rbf_layer(x2, centers2, values2, eps=eps2, tn=128, mc=128)
    )
    ref2 = rbf_layer_ref(x2, centers2, values2, eps=eps2)
    assert out2.shape == ref2.shape == (N2, DV2)
    assert jnp.allclose(out2, ref2, atol=2e-3, rtol=1e-3), "case 2 mismatch vs reference"

    print("KERNEL_OK")
</pallas_src>

<mosaic_0001>
module attributes {stable_mosaic.version = 11 : i64} {
  func.func @rbf_kernel(%arg0: i32, %arg1: i32, %arg2: memref<2x256xf32, #tpu.memory_space<vmem>>, %arg3: memref<128x2xf32, #tpu.memory_space<vmem>>, %arg4: memref<1x128xf32, #tpu.memory_space<vmem>>, %arg5: memref<1x256xf32, #tpu.memory_space<vmem>>, %arg6: memref<1x256xf32, #tpu.memory_space<vmem>>) attributes {dimension_semantics = [#tpu.dimension_semantics<parallel>, #tpu.dimension_semantics<arbitrary>], iteration_bounds = array<i64: 1, 1>, scalar_prefetch = 0 : i64, scratch_operands = 1 : i64, tpu.core_type = #tpu.core_type<tc>, window_params = [{transform_indices = @transform_0, window_bounds = array<i64: 2, 256>}, {transform_indices = @transform_1, window_bounds = array<i64: 128, 2>}, {transform_indices = @transform_2, window_bounds = array<i64: 1, 128>}, {transform_indices = @transform_3, window_bounds = array<i64: 1, 256>}]} {
    %c0_i32 = arith.constant 0 : i32
    %0 = arith.cmpi eq, %arg1, %c0_i32 : i32
    %1 = arith.extui %0 : i1 to i32
    %c0_i32_0 = arith.constant 0 : i32
    %2 = arith.cmpi ne, %1, %c0_i32_0 : i32
    scf.if %2 {
      %cst_13 = arith.constant 0.000000e+00 : f32
      %29 = vector.broadcast %cst_13 : f32 to vector<1x256xf32>
      %c0_14 = arith.constant 0 : index
      %c0_15 = arith.constant 0 : index
      %30 = vector.load %arg6[%c0_14, %c0_15] : memref<1x256xf32, #tpu.memory_space<vmem>>, vector<1x256xf32>
      tpu.vector_store %arg6[%c0_14, %c0_15], %29 {strides = array<i32>} : memref<1x256xf32, #tpu.memory_space<vmem>>, vector<1x256xf32>,
    } else {
    }
    %c0 = arith.constant 0 : index
    %c0_1 = arith.constant 0 : index
    %3 = vector.load %arg2[%c0, %c0_1] : memref<2x256xf32, #tpu.memory_space<vmem>>, vector<2x256xf32>
    %c0_2 = arith.constant 0 : index
    %c0_3 = arith.constant 0 : index
    %4 = vector.load %arg3[%c0_2, %c0_3] : memref<128x2xf32, #tpu.memory_space<vmem>>, vector<128x2xf32>
    %5 = vector.extract_strided_slice %4 {offsets = [0, 0], sizes = [128, 1], strides = [1, 1]} : vector<128x2xf32> to vector<128x1xf32>
    %6 = vector.extract_strided_slice %3 {offsets = [0, 0], sizes = [1, 256], strides = [1, 1]} : vector<2x256xf32> to vector<1x256xf32>
    %7 = vector.broadcast %5 : vector<128x1xf32> to vector<128x256xf32>
    %8 = vector.broadcast %6 : vector<1x256xf32> to vector<128x256xf32>
    %9 = arith.subf %7, %8 : vector<128x256xf32>
    %10 = vector.extract_strided_slice %4 {offsets = [0, 1], sizes = [128, 1], strides = [1, 1]} : vector<128x2xf32> to vector<128x1xf32>
    %11 = vector.extract_strided_slice %3 {offsets = [1, 0], sizes = [1, 256], strides = [1, 1]} : vector<2x256xf32> to vector<1x256xf32>
    %12 = vector.broadcast %10 : vector<128x1xf32> to vector<128x256xf32>
    %13 = vector.broadcast %11 : vector<1x256xf32> to vector<128x256xf32>
    %14 = arith.subf %12, %13 : vector<128x256xf32>
    %15 = arith.mulf %9, %9 : vector<128x256xf32>
    %16 = arith.mulf %14, %14 : vector<128x256xf32>
    %17 = arith.addf %15, %16 : vector<128x256xf32>
    %cst = arith.constant -1.000000e+00 : f32
    %18 = vector.broadcast %cst : f32 to vector<128x256xf32>
    %19 = arith.mulf %18, %17 : vector<128x256xf32>
    %20 = math.exp %19 : vector<128x256xf32>
    %c0_4 = arith.constant 0 : index
    %c0_5 = arith.constant 0 : index
    %21 = vector.load %arg6[%c0_4, %c0_5] : memref<1x256xf32, #tpu.memory_space<vmem>>, vector<1x256xf32>
    %c0_6 = arith.constant 0 : index
    %c0_7 = arith.constant 0 : index
    %22 = vector.load %arg4[%c0_6, %c0_7] : memref<1x128xf32, #tpu.memory_space<vmem>>, vector<1x128xf32>
    %cst_8 = arith.constant dense<0.000000e+00> : vector<1x256xf32>
    %23 = tpu.matmul %22, %20, %cst_8 {dimension_numbers = #tpu.dot_dimension_numbers<[1], [0], [0], [1], [0, 0, 1, 1], [], []>} : vector<1x128xf32>, vector<128x256xf32>, vector<1x256xf32> -> vector<1x256xf32>
    %24 = arith.addf %21, %23 : vector<1x256xf32>
    %c0_9 = arith.constant 0 : index
    %c0_10 = arith.constant 0 : index
    %25 = vector.load %arg6[%c0_9, %c0_10] : memref<1x256xf32, #tpu.memory_space<vmem>>, vector<1x256xf32>
    tpu.vector_store %arg6[%c0_9, %c0_10], %24 {strides = array<i32>} : memref<1x256xf32, #tpu.memory_space<vmem>>, vector<1x256xf32>,
    %c0_i32_11 = arith.constant 0 : i32
    %26 = arith.cmpi eq, %arg1, %c0_i32_11 : i32
    %27 = arith.extui %26 : i1 to i32
    %c0_i32_12 = arith.constant 0 : i32
    %28 = arith.cmpi ne, %27, %c0_i32_12 : i32
    scf.if %28 {
      %c0_13 = arith.constant 0 : index
      %c0_14 = arith.constant 0 : index
      %29 = vector.load %arg6[%c0_13, %c0_14] : memref<1x256xf32, #tpu.memory_space<vmem>>, vector<1x256xf32>
      %c0_15 = arith.constant 0 : index
      %c0_16 = arith.constant 0 : index
      %30 = vector.load %arg5[%c0_15, %c0_16] : memref<1x256xf32, #tpu.memory_space<vmem>>, vector<1x256xf32>
      tpu.vector_store %arg5[%c0_15, %c0_16], %29 {strides = array<i32>} : memref<1x256xf32, #tpu.memory_space<vmem>>, vector<1x256xf32>,
    } else {
    }
    return
  }
  func.func @transform_0(%arg0: i32, %arg1: i32) -> (i32, i32) {
    %c0_i32 = arith.constant 0 : i32
    %c0_i32_0 = arith.constant 0 : i32
    return %c0_i32, %arg0 : i32, i32
  }
  func.func @transform_1(%arg0: i32, %arg1: i32) -> (i32, i32) {
    %c0_i32 = arith.constant 0 : i32
    %c0_i32_0 = arith.constant 0 : i32
    return %arg1, %c0_i32 : i32, i32
  }
  func.func @transform_2(%arg0: i32, %arg1: i32) -> (i32, i32) {
    %c0_i32 = arith.constant 0 : i32
    %c0_i32_0 = arith.constant 0 : i32
    return %c0_i32, %arg1 : i32, i32
  }
  func.func @transform_3(%arg0: i32, %arg1: i32) -> (i32, i32) {
    %c0_i32 = arith.constant 0 : i32
    %c0_i32_0 = arith.constant 0 : i32
    return %c0_i32, %arg0 : i32, i32
  }
}

</mosaic_0001>

<llo_original>
// kernel: tpu_custom_call.1
$region0: #{tpu_custom_call.1}
  #allocation0 [shape = 'u32[]', space=smem, size = 0x4, offset = 0x4, fixed_abs, tag = 'smem constant byte address 0x4 - core index']
  #allocation1 [shape = 'u32[144,128]{1,0:T(1,128)}', space=vmem, size = 0x12000, scoped, tag = 'internal scratch']
  #allocation2 [shape = 'f32[1,256]{1,0:T(1,128)}', space=vmem, size = 0x400, scoped, tag = 'scratch operand']
  %s0 = inlined_call_operand.vmem [shape: f32[2,256], index: 0, kind: input, shape index: {}]
  %s1 = inlined_call_operand.vmem [shape: f32[128,2], index: 1, kind: input, shape index: {}]
  %s2 = inlined_call_operand.vmem [shape: f32[1,128], index: 2, kind: input, shape index: {}]
  %s3 = inlined_call_operand.hbm [shape: f32[1,256], index: 3, kind: output, shape index: {}]
  %s4 = sld [smem:[#allocation0]]
  $region30: #{tpu_custom_call.1} parent=0
    _
  %s6 = ssub.s32 1, %s4
  %s7 = scalar_select 0, %s6, %s4
  $region1: #{tpu_custom_call.1} parent=0
    #allocation3 [shape = 'u8[1024]{0}', space=vmem, size = 0x400, scoped, tag = 'output window, operand 0, single buffered']
    #allocation4 [shape = 's32[1]{0}', space=sflag, size = 0x4, scoped, tag = 'scoped memory for tpu_custom_call.1']
    %8 = vsyncpa [#allocation4], 0
    // Predicated region
    $region2: #{tpu_custom_call.1} parent=1 // pred_check
      _
    $region3: #{tpu_custom_call.1} parent=1 // pred_check_branch
      %10 = sbr.rel (0) target = $region5
    $region4: #{tpu_custom_call.1} parent=1 // pred_region
      _
    $region5: #{tpu_custom_call.1} parent=1 // pred_fallthru
      _
    // Predicated region
    $region6: #{tpu_custom_call.1} parent=1 // pred_check
      _
    $region7: #{tpu_custom_call.1} parent=1 // pred_check_branch
      %12 = sbr.rel (0) target = $region9
    $region8: #{tpu_custom_call.1} parent=1 // pred_region
      _
    $region9: #{tpu_custom_call.1} parent=1 // pred_fallthru
      _
    // Predicated region
    $region10: #{tpu_custom_call.1} parent=1 // pred_check
      _
    $region11: #{tpu_custom_call.1} parent=1 // pred_check_branch
      %14 = sbr.rel (0) target = $region13
    $region12: #{tpu_custom_call.1} parent=1 // pred_region
      _
    $region13: #{tpu_custom_call.1} parent=1 // pred_fallthru
      _
    %p15 = scmp.eq.s32.totalorder 0, 0
    // Predicated region
    $region14: #{tpu_custom_call.1} parent=1 // pred_check
      %p16 = pneg %p15
    $region15: #{tpu_custom_call.1} parent=1 // pred_check_branch
      %18 = sbr.rel (%p16) target = $region17
    $region16: #{tpu_custom_call.1} parent=1 // pred_region
      %v19 = vlaneseq
      %vm20 = vcmp.ge.s32.totalorder %v19, 0
      %vm21 = vcmp.lt.s32.totalorder %v19, 256
      %vm22 = vmand %vm20, %vm21
      %23 = vst.msk [vmem:[#allocation2] sm:$0x3] %vm22, 0.0
    $region17: #{tpu_custom_call.1} parent=1 // pred_fallthru
      _
    %v24 = vld [vmem:[%s0] sm:$0xf]
    %v25 = vld [vmem:[%s1] sm:$0xff]
    %v26 = vld [vmem:[%s1 + $0x8] sm:$0xff]
    %v27 = vld [vmem:[%s1 + $0x10] sm:$0xff]
    %v28 = vld [vmem:[%s1 + $0x18] sm:$0xff]
    %v29 = vld [vmem:[%s1 + $0x20] sm:$0xff]
    %v30 = vld [vmem:[%s1 + $0x28] sm:$0xff]
    %v31 = vld [vmem:[%s1 + $0x30] sm:$0xff]
    %v32 = vld [vmem:[%s1 + $0x38] sm:$0xff]
    %v33 = vld [vmem:[%s1 + $0x40] sm:$0xff]
    %v34 = vld [vmem:[%s1 + $0x48] sm:$0xff]
    %v35 = vld [vmem:[%s1 + $0x50] sm:$0xff]
    %v36 = vld [vmem:[%s1 + $0x58] sm:$0xff]
    %v37 = vld [vmem:[%s1 + $0x60] sm:$0xff]
    %v38 = vld [vmem:[%s1 + $0x68] sm:$0xff]
    %v39 = vld [vmem:[%s1 + $0x70] sm:$0xff]
    %v40 = vld [vmem:[%s1 + $0x78] sm:$0xff]
    %42 = vset.pattern.permute.xlu0 0
    %43 = vperm.xlu0 %42, %v25
    %v44 = vpop.permute.xlu0 %43
    %47 = vset.pattern.permute.xlu0 0
    %48 = vperm.xlu0 %47, %v26
    %v49 = vpop.permute.xlu0 %48
    %52 = vset.pattern.permute.xlu0 0
    %53 = vperm.xlu0 %52, %v27
    %v54 = vpop.permute.xlu0 %53
    %57 = vset.pattern.permute.xlu0 0
    %58 = vperm.xlu0 %57, %v28
    %v59 = vpop.permute.xlu0 %58
    %62 = vset.pattern.permute.xlu0 0
    %63 = vperm.xlu0 %62, %v29
    %v64 = vpop.permute.xlu0 %63
    %67 = vset.pattern.permute.xlu0 0
    %68 = vperm.xlu0 %67, %v30
    %v69 = vpop.permute.xlu0 %68
    %72 = vset.pattern.permute.xlu0 0
    %73 = vperm.xlu0 %72, %v31
    %v74 = vpop.permute.xlu0 %73
    %77 = vset.pattern.permute.xlu0 0
    %78 = vperm.xlu0 %77, %v32
    %v79 = vpop.permute.xlu0 %78
    %82 = vset.pattern.permute.xlu0 0
    %83 = vperm.xlu0 %82, %v33
    %v84 = vpop.permute.xlu0 %83
    %87 = vset.pattern.permute.xlu0 0
    %88 = vperm.xlu0 %87, %v34
    %v89 = vpop.permute.xlu0 %88
    %92 = vset.pattern.permute.xlu0 0
    %93 = vperm.xlu0 %92, %v35
    %v94 = vpop.permute.xlu0 %93
    %97 = vset.pattern.permute.xlu0 0
    %98 = vperm.xlu0 %97, %v36
    %v99 = vpop.permute.xlu0 %98
    %102 = vset.pattern.permute.xlu0 0
    %103 = vperm.xlu0 %102, %v37
    %v104 = vpop.permute.xlu0 %103
    %107 = vset.pattern.permute.xlu0 0
    %108 = vperm.xlu0 %107, %v38
    %v109 = vpop.permute.xlu0 %108
    %112 = vset.pattern.permute.xlu0 0
    %113 = vperm.xlu0 %112, %v39
    %v114 = vpop.permute.xlu0 %113
    %117 = vset.pattern.permute.xlu0 0
    %118 = vperm.xlu0 %117, %v40
    %v119 = vpop.permute.xlu0 %118
    %v122 = vlaneseq
    %v123 = vshrl.u32 %v122, 7
    %v124 = vsub.s32 0, %v123
    %v125 = vrot.slane %v24, %v124
    %v126 = vlaneseq
    %v127 = vshrl.u32 %v126, 7
    %v128 = vsub.s32 2, %v127
    %v129 = vrot.slane %v24, %v128
    %v132 = vlaneseq
    %v133 = vshrl.u32 %v132, 7
    %v134 = vsub.s32 0, %v133
    %v135 = vrot.slane %v125, %v134
    %v136 = vlaneseq
    %v137 = vshrl.u32 %v136, 7
    %v138 = vsub.s32 0, %v137
    %v139 = vrot.slane %v129, %v138
    %v140 = vsub.f32 %v44, %v135
    %v141 = vsub.f32 %v44, %v139
    %v142 = vsub.f32 %v49, %v135
    %v143 = vsub.f32 %v49, %v139
    %v144 = vsub.f32 %v54, %v135
    %v145 = vsub.f32 %v54, %v139
    %v146 = vsub.f32 %v59, %v135
    %v147 = vsub.f32 %v59, %v139
    %v148 = vsub.f32 %v64, %v135
    %v149 = vsub.f32 %v64, %v139
    %v150 = vsub.f32 %v69, %v135
    %v151 = vsub.f32 %v69, %v139
    %v152 = vsub.f32 %v74, %v135
    %v153 = vsub.f32 %v74, %v139
    %v154 = vsub.f32 %v79, %v135
    %v155 = vsub.f32 %v79, %v139
    %v156 = vsub.f32 %v84, %v135
    %v157 = vsub.f32 %v84, %v139
    %v158 = vsub.f32 %v89, %v135
    %v159 = vsub.f32 %v89, %v139
    %v160 = vsub.f32 %v94, %v135
    %v161 = vsub.f32 %v94, %v139
    %v162 = vsub.f32 %v99, %v135
    %v163 = vsub.f32 %v99, %v139
    %v164 = vsub.f32 %v104, %v135
    %v165 = vsub.f32 %v104, %v139
    %v166 = vsub.f32 %v109, %v135
    %v167 = vsub.f32 %v109, %v139
    %v168 = vsub.f32 %v114, %v135
    %v169 = vsub.f32 %v114, %v139
    %v170 = vsub.f32 %v119, %v135
    %v171 = vsub.f32 %v119, %v139
    %172 = vset.pattern.permute.xlu0 1
    %173 = vperm.xlu0 %172, %v25
    %v174 = vpop.permute.xlu0 %173
    %176 = vset.pattern.permute.xlu0 1
    %177 = vperm.xlu0 %176, %v26
    %v178 = vpop.permute.xlu0 %177
    %180 = vset.pattern.permute.xlu0 1
    %181 = vperm.xlu0 %180, %v27
    %v182 = vpop.permute.xlu0 %181
    %184 = vset.pattern.permute.xlu0 1
    %185 = vperm.xlu0 %184, %v28
    %v186 = vpop.permute.xlu0 %185
    %188 = vset.pattern.permute.xlu0 1
    %189 = vperm.xlu0 %188, %v29
    %v190 = vpop.permute.xlu0 %189
    %192 = vset.pattern.permute.xlu0 1
    %193 = vperm.xlu0 %192, %v30
    %v194 = vpop.permute.xlu0 %193
    %196 = vset.pattern.permute.xlu0 1
    %197 = vperm.xlu0 %196, %v31
    %v198 = vpop.permute.xlu0 %197
    %200 = vset.pattern.permute.xlu0 1
    %201 = vperm.xlu0 %200, %v32
    %v202 = vpop.permute.xlu0 %201
    %204 = vset.pattern.permute.xlu0 1
    %205 = vperm.xlu0 %204, %v33
    %v206 = vpop.permute.xlu0 %205
    %208 = vset.pattern.permute.xlu0 1
    %209 = vperm.xlu0 %208, %v34
    %v210 = vpop.permute.xlu0 %209
    %212 = vset.pattern.permute.xlu0 1
    %213 = vperm.xlu0 %212, %v35
    %v214 = vpop.permute.xlu0 %213
    %216 = vset.pattern.permute.xlu0 1
    %217 = vperm.xlu0 %216, %v36
    %v218 = vpop.permute.xlu0 %217
    %220 = vset.pattern.permute.xlu0 1
    %221 = vperm.xlu0 %220, %v37
    %v222 = vpop.permute.xlu0 %221
    %224 = vset.pattern.permute.xlu0 1
    %225 = vperm.xlu0 %224, %v38
    %v226 = vpop.permute.xlu0 %225
    %228 = vset.pattern.permute.xlu0 1
    %229 = vperm.xlu0 %228, %v39
    %v230 = vpop.permute.xlu0 %229
    %232 = vset.pattern.permute.xlu0 1
    %233 = vperm.xlu0 %232, %v40
    %v234 = vpop.permute.xlu0 %233
    %v236 = vlaneseq
    %v237 = vshrl.u32 %v236, 7
    %v238 = vsub.s32 1, %v237
    %v239 = vrot.slane %v24, %v238
    %v240 = vlaneseq
    %v241 = vshrl.u32 %v240, 7
    %v242 = vsub.s32 3, %v241
    %v243 = vrot.slane %v24, %v242
    %v246 = vlaneseq
    %v247 = vshrl.u32 %v246, 7
    %v248 = vsub.s32 1, %v247
    %v249 = vrot.slane %v239, %v248
    %v250 = vlaneseq
    %v251 = vshrl.u32 %v250, 7
    %v252 = vsub.s32 1, %v251
    %v253 = vrot.slane %v243, %v252
    %v254 = vsub.f32 %v174, %v249
    %v255 = vsub.f32 %v174, %v253
    %v256 = vsub.f32 %v178, %v249
    %v257 = vsub.f32 %v178, %v253
    %v258 = vsub.f32 %v182, %v249
    %v259 = vsub.f32 %v182, %v253
    %v260 = vsub.f32 %v186, %v249
    %v261 = vsub.f32 %v186, %v253
    %v262 = vsub.f32 %v190, %v249
    %v263 = vsub.f32 %v190, %v253
    %v264 = vsub.f32 %v194, %v249
    %v265 = vsub.f32 %v194, %v253
    %v266 = vsub.f32 %v198, %v249
    %v267 = vsub.f32 %v198, %v253
    %v268 = vsub.f32 %v202, %v249
    %v269 = vsub.f32 %v202, %v253
    %v270 = vsub.f32 %v206, %v249
    %v271 = vsub.f32 %v206, %v253
    %v272 = vsub.f32 %v210, %v249
    %v273 = vsub.f32 %v210, %v253
    %v274 = vsub.f32 %v214, %v249
    %v275 = vsub.f32 %v214, %v253
    %v276 = vsub.f32 %v218, %v249
    %v277 = vsub.f32 %v218, %v253
    %v278 = vsub.f32 %v222, %v249
    %v279 = vsub.f32 %v222, %v253
    %v280 = vsub.f32 %v226, %v249
    %v281 = vsub.f32 %v226, %v253
    %v282 = vsub.f32 %v230, %v249
    %v283 = vsub.f32 %v230, %v253
    %v284 = vsub.f32 %v234, %v249
    %v285 = vsub.f32 %v234, %v253
    %v286 = vmul.f32 %v140, %v140
    %v287 = vmul.f32 %v141, %v141
    %v288 = vmul.f32 %v142, %v142
    %v289 = vmul.f32 %v143, %v143
    %v290 = vmul.f32 %v144, %v144
    %v291 = vmul.f32 %v145, %v145
    %v292 = vmul.f32 %v146, %v146
    %v293 = vmul.f32 %v147, %v147
    %v294 = vmul.f32 %v148, %v148
    %v295 = vmul.f32 %v149, %v149
    %v296 = vmul.f32 %v150, %v150
    %v297 = vmul.f32 %v151, %v151
    %v298 = vmul.f32 %v152, %v152
    %v299 = vmul.f32 %v153, %v153
    %v300 = vmul.f32 %v154, %v154
    %v301 = vmul.f32 %v155, %v155
    %v302 = vmul.f32 %v156, %v156
    %v303 = vmul.f32 %v157, %v157
    %v304 = vmul.f32 %v158, %v158
    %v305 = vmul.f32 %v159, %v159
    %v306 = vmul.f32 %v160, %v160
    %v307 = vmul.f32 %v161, %v161
    %v308 = vmul.f32 %v162, %v162
    %v309 = vmul.f32 %v163, %v163
    %v310 = vmul.f32 %v164, %v164
    %v311 = vmul.f32 %v165, %v165
    %v312 = vmul.f32 %v166, %v166
    %v313 = vmul.f32 %v167, %v167
    %v314 = vmul.f32 %v168, %v168
    %v315 = vmul.f32 %v169, %v169
    %v316 = vmul.f32 %v170, %v170
    %v317 = vmul.f32 %v171, %v171
    %v318 = vmul.f32 %v254, %v254
    %v319 = vmul.f32 %v255, %v255
    %v320 = vmul.f32 %v256, %v256
    %v321 = vmul.f32 %v257, %v257
    %v322 = vmul.f32 %v258, %v258
    %v323 = vmul.f32 %v259, %v259
    %v324 = vmul.f32 %v260, %v260
    %v325 = vmul.f32 %v261, %v261
    %v326 = vmul.f32 %v262, %v262
    %v327 = vmul.f32 %v263, %v263
    %v328 = vmul.f32 %v264, %v264
    %v329 = vmul.f32 %v265, %v265
    %v330 = vmul.f32 %v266, %v266
    %v331 = vmul.f32 %v267, %v267
    %v332 = vmul.f32 %v268, %v268
    %v333 = vmul.f32 %v269, %v269
    %v334 = vmul.f32 %v270, %v270
    %v335 = vmul.f32 %v271, %v271
    %v336 = vmul.f32 %v272, %v272
    %v337 = vmul.f32 %v273, %v273
    %v338 = vmul.f32 %v274, %v274
    %v339 = vmul.f32 %v275, %v275
    %v340 = vmul.f32 %v276, %v276
    %v341 = vmul.f32 %v277, %v277
    %v342 = vmul.f32 %v278, %v278
    %v343 = vmul.f32 %v279, %v279
    %v344 = vmul.f32 %v280, %v280
    %v345 = vmul.f32 %v281, %v281
    %v346 = vmul.f32 %v282, %v282
    %v347 = vmul.f32 %v283, %v283
    %v348 = vmul.f32 %v284, %v284
    %v349 = vmul.f32 %v285, %v285
    %v350 = vadd.f32 %v286, %v318
    %v351 = vadd.f32 %v287, %v319
    %v352 = vadd.f32 %v288, %v320
    %v353 = vadd.f32 %v289, %v321
    %v354 = vadd.f32 %v290, %v322
    %v355 = vadd.f32 %v291, %v323
    %v356 = vadd.f32 %v292, %v324
    %v357 = vadd.f32 %v293, %v325
    %v358 = vadd.f32 %v294, %v326
    %v359 = vadd.f32 %v295, %v327
    %v360 = vadd.f32 %v296, %v328
    %v361 = vadd.f32 %v297, %v329
    %v362 = vadd.f32 %v298, %v330
    %v363 = vadd.f32 %v299, %v331
    %v364 = vadd.f32 %v300, %v332
    %v365 = vadd.f32 %v301, %v333
    %v366 = vadd.f32 %v302, %v334
    %v367 = vadd.f32 %v303, %v335
    %v368 = vadd.f32 %v304, %v336
    %v369 = vadd.f32 %v305, %v337
    %v370 = vadd.f32 %v306, %v338
    %v371 = vadd.f32 %v307, %v339
    %v372 = vadd.f32 %v308, %v340
    %v373 = vadd.f32 %v309, %v341
    %v374 = vadd.f32 %v310, %v342
    %v375 = vadd.f32 %v311, %v343
    %v376 = vadd.f32 %v312, %v344
    %v377 = vadd.f32 %v313, %v345
    %v378 = vadd.f32 %v314, %v346
    %v379 = vadd.f32 %v315, %v347
    %v380 = vadd.f32 %v316, %v348
    %v381 = vadd.f32 %v317, %v349
    %v382 = vmul.f32 %v350, -1.0
    %v383 = vmul.f32 %v351, -1.0
    %v384 = vmul.f32 %v352, -1.0
    %v385 = vmul.f32 %v353, -1.0
    %v386 = vmul.f32 %v354, -1.0
    %v387 = vmul.f32 %v355, -1.0
    %v388 = vmul.f32 %v356, -1.0
    %v389 = vmul.f32 %v357, -1.0
    %v390 = vmul.f32 %v358, -1.0
    %v391 = vmul.f32 %v359, -1.0
    %v392 = vmul.f32 %v360, -1.0
    %v393 = vmul.f32 %v361, -1.0
    %v394 = vmul.f32 %v362, -1.0
    %v395 = vmul.f32 %v363, -1.0
    %v396 = vmul.f32 %v364, -1.0
    %v397 = vmul.f32 %v365, -1.0
    %v398 = vmul.f32 %v366, -1.0
    %v399 = vmul.f32 %v367, -1.0
    %v400 = vmul.f32 %v368, -1.0
    %v401 = vmul.f32 %v369, -1.0
    %v402 = vmul.f32 %v370, -1.0
    %v403 = vmul.f32 %v371, -1.0
    %v404 = vmul.f32 %v372, -1.0
    %v405 = vmul.f32 %v373, -1.0
    %v406 = vmul.f32 %v374, -1.0
    %v407 = vmul.f32 %v375, -1.0
    %v408 = vmul.f32 %v376, -1.0
    %v409 = vmul.f32 %v377, -1.0
    %v410 = vmul.f32 %v378, -1.0
    %v411 = vmul.f32 %v379, -1.0
    %v412 = vmul.f32 %v380, -1.0
    %v413 = vmul.f32 %v381, -1.0
    %v414 = vmul.f32 %v382, 1.442695
    %v415 = vpow.pop %v414
    %v416 = vmul.f32 %v383, 1.442695
    %v417 = vpow.pop %v416
    %v418 = vmul.f32 %v384, 1.442695
    %v419 = vpow.pop %v418
    %v420 = vmul.f32 %v385, 1.442695
    %v421 = vpow.pop %v420
    %v422 = vmul.f32 %v386, 1.442695
    %v423 = vpow.pop %v422
    %v424 = vmul.f32 %v387, 1.442695
    %v425 = vpow.pop %v424
    %v426 = vmul.f32 %v388, 1.442695
    %v427 = vpow.pop %v426
    %v428 = vmul.f32 %v389, 1.442695
    %v429 = vpow.pop %v428
    %v430 = vmul.f32 %v390, 1.442695
    %v431 = vpow.pop %v430
    %v432 = vmul.f32 %v391, 1.442695
    %v433 = vpow.pop %v432
    %v434 = vmul.f32 %v392, 1.442695
    %v435 = vpow.pop %v434
    %v436 = vmul.f32 %v393, 1.442695
    %v437 = vpow.pop %v436
    %v438 = vmul.f32 %v394, 1.442695
    %v439 = vpow.pop %v438
    %v440 = vmul.f32 %v395, 1.442695
    %v441 = vpow.pop %v440
    %v442 = vmul.f32 %v396, 1.442695
    %v443 = vpow.pop %v442
    %v444 = vmul.f32 %v397, 1.442695
    %v445 = vpow.pop %v444
    %v446 = vmul.f32 %v398, 1.442695
    %v447 = vpow.pop %v446
    %v448 = vmul.f32 %v399, 1.442695
    %v449 = vpow.pop %v448
    %v450 = vmul.f32 %v400, 1.442695
    %v451 = vpow.pop %v450
    %v452 = vmul.f32 %v401, 1.442695
    %v453 = vpow.pop %v452
    %v454 = vmul.f32 %v402, 1.442695
    %v455 = vpow.pop %v454
    %v456 = vmul.f32 %v403, 1.442695
    %v457 = vpow.pop %v456
    %v458 = vmul.f32 %v404, 1.442695
    %v459 = vpow.pop %v458
    %v460 = vmul.f32 %v405, 1.442695
    %v461 = vpow.pop %v460
    %v462 = vmul.f32 %v406, 1.442695
    %v463 = vpow.pop %v462
    %v464 = vmul.f32 %v407, 1.442695
    %v465 = vpow.pop %v464
    %v466 = vmul.f32 %v408, 1.442695
    %v467 = vpow.pop %v466
    %v468 = vmul.f32 %v409, 1.442695
    %v469 = vpow.pop %v468
    %v470 = vmul.f32 %v410, 1.442695
    %v471 = vpow.pop %v470
    %v472 = vmul.f32 %v411, 1.442695
    %v473 = vpow.pop %v472
    %v474 = vmul.f32 %v412, 1.442695
    %v475 = vpow.pop %v474
    %v476 = vmul.f32 %v413, 1.442695
    %v477 = vpow.pop %v476
    %v478 = vld [vmem:[#allocation2] sm:$0x3]
    %v479 = vld [vmem:[%s2] sm:$0x1]
    %480 = vmatprep.subr.mxu0 %v477
    %481 = vmatpush1.msra.mxu0 %v475
    %482 = vmatprep.subr.mxu0 %v473
    %483 = vmatpush1.msra.mxu0 %v471
    %484 = vmatprep.subr.mxu0 %v469
    %485 = vmatpush1.msra.mxu0 %v467
    %486 = vmatprep.subr.mxu0 %v465
    %487 = vmatpush1.msra.mxu0 %v463
    %488 = vmatprep.subr.mxu0 %v461
    %489 = vmatpush1.msra.mxu0 %v459
    %490 = vmatprep.subr.mxu0 %v457
    %491 = vmatpush1.msra.mxu0 %v455
    %492 = vmatprep.subr.mxu0 %v453
    %493 = vmatpush1.msra.mxu0 %v451
    %494 = vmatprep.subr.mxu0 %v449
    %495 = vmatpush1.msra.mxu0 %v447
    %496 = vmatprep.subr.mxu0 %v445
    %497 = vmatpush1.msra.mxu0 %v443
    %498 = vmatprep.subr.mxu0 %v441
    %499 = vmatpush1.msra.mxu0 %v439
    %500 = vmatprep.subr.mxu0 %v437
    %501 = vmatpush1.msra.mxu0 %v435
    %502 = vmatprep.subr.mxu0 %v433
    %503 = vmatpush1.msra.mxu0 %v431
    %504 = vmatprep.subr.mxu0 %v429
    %505 = vmatpush1.msra.mxu0 %v427
    %506 = vmatprep.subr.mxu0 %v425
    %507 = vmatpush1.msra.mxu0 %v423
    %508 = vmatprep.subr.mxu0 %v421
    %509 = vmatpush1.msra.mxu0 %v419
    %510 = vmatprep.subr.mxu0 %v417
    %511 = vmatpush1.msra.mxu0 %v415
    %512 = vmatprep.subr.mxu0 0.0
    %513 = vmatpush2.msra.mxu0 0.0
    %514 = vmatprep.subr.mxu0 0.0
    %515 = vmatpush2.msra.mxu0 0.0
    %516 = vmatprep.subr.mxu0 0.0
    %517 = vmatpush2.msra.mxu0 0.0
    %518 = vmatprep.subr.mxu0 0.0
    %519 = vmatpush2.msra.mxu0 0.0
    %520 = vmatprep.subr.mxu0 0.0
    %521 = vmatpush2.msra.mxu0 0.0
    %522 = vmatprep.subr.mxu0 0.0
    %523 = vmatpush2.msra.mxu0 0.0
    %524 = vmatprep.subr.mxu0 0.0
    %525 = vmatpush2.msra.mxu0 0.0
    %526 = vmatprep.subr.mxu0 0.0
    %527 = vmatpush2.msra.mxu0 0.0
    %528 = vmatprep.subr.mxu0 0.0
    %529 = vmatpush2.msra.mxu0 0.0
    %530 = vmatprep.subr.mxu0 0.0
    %531 = vmatpush2.msra.mxu0 0.0
    %532 = vmatprep.subr.mxu0 0.0
    %533 = vmatpush2.msra.mxu0 0.0
    %534 = vmatprep.subr.mxu0 0.0
    %535 = vmatpush2.msra.mxu0 0.0
    %536 = vmatprep.subr.mxu0 0.0
    %537 = vmatpush2.msra.mxu0 0.0
    %538 = vmatprep.subr.mxu0 0.0
    %539 = vmatpush2.msra.mxu0 0.0
    %540 = vmatprep.subr.mxu0 0.0
    %541 = vmatpush2.msra.mxu0 0.0
    %542 = vmatprep.subr.mxu0 0.0
    %543 = vmatpush2.msra.mxu0 0.0
    %544 = vmatprep.mubr.f32.mxu0 0.0
    %545 = vmatmul.mubr.f32.gmra.mxu0 %v479
    %v546 = vpop.f32.mrf.mxu0
    %v547 = vadd.f32 0.0, %v546
    %v548 = vpop.f32.mrf.mxu0
    %v549 = vadd.f32 0.0, %v548
    %550 = vdwg.mxu0
    %v553 = vcombine.low %v547, %v549
    %v555 = vunpack.c.l.s4 1966171168
    %v556 = vunpack.c.0.s8 %v555
    %v557 = vlaneseq
    %v558 = vshrl.u32 %v557, 7
    %v559 = vsub.s32 %v556, %v558
    %v560 = vrot.slane %v553, %v559
    %v562 = vunpack.c.l.s4 1966171168
    %v563 = vunpack.c.0.s8 %v562
    %v564 = vlaneseq
    %v565 = vshrl.u32 %v564, 7
    %v566 = vsub.s32 %v563, %v565
    %v567 = vrot.slane %v560, %v566
    %v569 = vadd.f32 %v478, %v567
    %v570 = vlaneseq
    %vm571 = vcmp.ge.s32.totalorder %v570, 0
    %vm572 = vcmp.lt.s32.totalorder %v570, 256
    %vm573 = vmand %vm571, %vm572
    %574 = vst.msk [vmem:[#allocation2] sm:$0x3] %vm573, %v569
    // Predicated region
    $region18: #{tpu_custom_call.1} parent=1 // pred_check
      %p575 = pneg %p15
    $region19: #{tpu_custom_call.1} parent=1 // pred_check_branch
      %577 = sbr.rel (%p575) target = $region21
    $region20: #{tpu_custom_call.1} parent=1 // pred_region
      %v578 = vld [vmem:[#allocation2] sm:$0x3]
      %579 = vst.msk [vmem:[#allocation3] sm:$0x3] %vm573, %v578
    $region21: #{tpu_custom_call.1} parent=1 // pred_fallthru
      _
    // Predicated region
    $region22: #{tpu_custom_call.1} parent=1 // pred_check
      _
    $region23: #{tpu_custom_call.1} parent=1 // pred_check_branch
      %581 = sbr.rel (0) target = $region25
    $region24: #{tpu_custom_call.1} parent=1 // pred_region
      %s583 = ssub.s32 32, 32
      %584 = vsyncadd [#allocation4], %s583
      %s586 = sshll.u32 [#allocation3], 4
      %s587 = int_to_ptr.vmem [resolvable:$true] %s586
      %589 = dma.vmem_to_hbm [thread:$0]  %s587, 32, %s3, [#allocation4]
    $region25: #{tpu_custom_call.1} parent=1 // pred_fallthru
      _
    // Predicated region
    $region26: #{tpu_custom_call.1} parent=1 // pred_check
      _
    $region27: #{tpu_custom_call.1} parent=1 // pred_check_branch
      %591 = sbr.rel (0) target = $region29
    $region28: #{tpu_custom_call.1} parent=1 // pred_region
      %592 = dma.done [#allocation4], 32
    $region29: #{tpu_custom_call.1} parent=1 // pred_fallthru
      _
    %593 = vsyncpa [#allocation4], 1

</llo_original>
